<compile_context>
chip_gen: v5e
topology: v5e:2x2
jax: 0.10.0
libtpu: 0.0.40
codegen_flags: <defaults>
</compile_context>

<pallas_src>
import functools

import jax
import jax.numpy as jnp
from jax.experimental import pallas as pl
from jax.experimental.pallas import tpu as pltpu


# --------------------------------------------------------------------------
# Hardware-aware sizing helpers
# --------------------------------------------------------------------------
def _vmem_capacity_bytes():
    """Per-core VMEM capacity; conservative v7x default if the query fails."""
    try:
        info = pltpu.get_tpu_info()
        for name in ("vmem_capacity_bytes", "vmem_size_bytes", "vmem_bytes"):
            v = getattr(info, name, None)
            if v:
                return int(v)
    except Exception:
        pass
    return 64 * 1024 * 1024


def _pick_hw_tile(hw, c, itemsize, target_bytes):
    """Largest lane-dense HW tile under `target_bytes` per (C, tile) buffer.
    Either the full HW (always a legal block) or a multiple of 128; the grid
    uses pl.cdiv and the kernels mask / rely on OOB write masking for tails."""
    max_lanes = max(128, (target_bytes // max(c * itemsize, 1)) // 128 * 128)
    if hw <= max_lanes:
        return hw
    return max_lanes


# --------------------------------------------------------------------------
# Fused single-pass kernel: pool + squeeze/excite + apply, one HBM read/write.
# --------------------------------------------------------------------------
def _fused_kernel(u_ref, wsq_ref, wex_ref, wsse_ref, o_ref, *, use_mxu):
    # u_ref: (1, C, HW); wsq_ref: (C//2, C) (already scaled by 1/HW);
    # wex_ref: (C, C//2); wsse_ref: (1, C) if use_mxu else (C, 1).
    u = u_ref[0].astype(jnp.float32)                               # (C, HW)

    # cSE: global average pool (1/HW folded into wsq) -> squeeze -> excite.
    pooled = jnp.sum(u, axis=1, keepdims=True)                     # (C, 1)
    z1 = jnp.dot(wsq_ref[...], pooled,
                 preferred_element_type=jnp.float32)               # (C//2, 1)
    z1 = jnp.where(z1 >= 0, z1, 0.01 * z1)                         # LeakyReLU
    z2 = jnp.dot(wex_ref[...], z1,
                 preferred_element_type=jnp.float32)               # (C, 1)
    chan = jax.nn.sigmoid(z2)                                      # (C, 1)

    # sSE: per-pixel channel contraction.
    if use_mxu:
        q = jnp.dot(wsse_ref[...], u,
                    preferred_element_type=jnp.float32)            # (1, HW)
    else:
        q = jnp.sum(u * wsse_ref[...], axis=0, keepdims=True)      # (1, HW)
    spat = jax.nn.sigmoid(q)

    # U*z + U*q == U * (z + q); cast only at the store.
    o_ref[0] = (u * (chan + spat)).astype(o_ref.dtype)


# --------------------------------------------------------------------------
# Two-pass fallback, stage 1: global sum over HW (f32), 2-way parallel split.
#   grid = (n_groups, N, tiles_per_group); last axis is the reduction.
# --------------------------------------------------------------------------
def _pool_kernel(u_ref, z_ref, *, hw, hw_tile, tiles_per_group, mask_tail):
    t = pl.program_id(2)

    @pl.when(t == 0)
    def _():
        z_ref[...] = jnp.zeros_like(z_ref)

    u = u_ref[0].astype(jnp.float32)                               # (C, hw_tile)
    if mask_tail:
        g = pl.program_id(0)
        start = (g * tiles_per_group + t) * hw_tile
        col = jax.lax.broadcasted_iota(jnp.int32, u.shape, 1) + start
        u = jnp.where(col < hw, u, 0.0)
    z_ref[0, 0] += jnp.sum(u, axis=1, keepdims=True)               # (C, 1)


# --------------------------------------------------------------------------
# Two-pass fallback, stage 2: fused channel + spatial gate apply.
# --------------------------------------------------------------------------
def _apply_kernel(u_ref, chan_ref, wsse_ref, o_ref, *, use_mxu):
    u = u_ref[0].astype(jnp.float32)                               # (C, hw_tile)
    if use_mxu:
        q = jnp.dot(wsse_ref[...], u,
                    preferred_element_type=jnp.float32)            # (1, hw_tile)
    else:
        q = jnp.sum(u * wsse_ref[...], axis=0, keepdims=True)      # (1, hw_tile)
    spat = jax.nn.sigmoid(q)
    chan = chan_ref[0]                                             # (C, 1)
    o_ref[0] = (u * (chan + spat)).astype(o_ref.dtype)


# --------------------------------------------------------------------------
# Wrapper
# --------------------------------------------------------------------------
def csse_forward(U_nchw, w_sq, w_ex, w_sse, *, donate_u=False,
                 max_fused_bytes=None, tile_target_bytes=None,
                 vmem_limit_bytes=None):
    """U_nchw: (N, C, H, W). Weights in PyTorch conv shapes:
       w_sq: (C//2, C, 1, 1), w_ex: (C, C//2, 1, 1), w_sse: (1, C, 1, 1)."""
    N, C, H, W = U_nchw.shape
    HW = H * W
    dtype = U_nchw.dtype
    itemsize = jnp.dtype(dtype).itemsize

    vmem_cap = _vmem_capacity_bytes()
    if max_fused_bytes is None:
        max_fused_bytes = vmem_cap // 16          # f32-slab budget for fusion
    if tile_target_bytes is None:
        tile_target_bytes = vmem_cap // 16        # per-buffer tile budget
    if vmem_limit_bytes is None:
        vmem_limit_bytes = (vmem_cap * 3) // 4

    u = U_nchw.reshape(N, C, HW)                  # free reshape, no transpose
    inv_hw = 1.0 / HW
    wsq_eff = (w_sq.reshape(C // 2, C) * inv_hw).astype(jnp.float32)  # fold 1/HW
    wex = w_ex.reshape(C, C // 2).astype(jnp.float32)

    use_mxu = C >= 128
    if use_mxu:
        wsse_op = w_sse.reshape(1, C).astype(jnp.float32)
        wsse_block = (1, C)
    else:
        wsse_op = w_sse.reshape(C, 1).astype(jnp.float32)
        wsse_block = (C, 1)

    io_alias = {0: 0} if donate_u else {}

    # ---------------- fused single-pass path (2x|U| HBM traffic) -----------
    if C * HW * 4 <= max_fused_bytes:
        out = pl.pallas_call(
            functools.partial(_fused_kernel, use_mxu=use_mxu),
            out_shape=jax.ShapeDtypeStruct((N, C, HW), dtype),
            grid=(N,),
            in_specs=[
                pl.BlockSpec((1, C, HW), lambda b: (b, 0, 0)),
                pl.BlockSpec((C // 2, C), lambda b: (0, 0)),
                pl.BlockSpec((C, C // 2), lambda b: (0, 0)),
                pl.BlockSpec(wsse_block, lambda b: (0, 0)),
            ],
            out_specs=pl.BlockSpec((1, C, HW), lambda b: (b, 0, 0)),
            compiler_params=pltpu.CompilerParams(
                dimension_semantics=("parallel",),
                vmem_limit_bytes=vmem_limit_bytes),
            input_output_aliases=io_alias,
        )(u, wsq_eff, wex, wsse_op)
        return out.reshape(N, C, H, W)

    # ---------------- two-pass fallback (slab too big for VMEM) ------------
    hw_tile = _pick_hw_tile(HW, C, itemsize, tile_target_bytes)
    n_tiles = pl.cdiv(HW, hw_tile)
    n_groups = 2 if n_tiles >= 2 else 1           # extra parallel axis (v7x 2 TCs)
    tpg = pl.cdiv(n_tiles, n_groups)
    mask_tail = (n_groups * tpg * hw_tile != HW)

    def pool_u_map(g, b, t):
        # Clamp fully-out-of-range tile indices (odd n_tiles); the in-kernel
        # mask zeroes their contribution.
        return (b, 0, jnp.minimum(g * tpg + t, n_tiles - 1))

    partial_sums = pl.pallas_call(
        functools.partial(_pool_kernel, hw=HW, hw_tile=hw_tile,
                          tiles_per_group=tpg, mask_tail=mask_tail),
        out_shape=jax.ShapeDtypeStruct((n_groups, N, C, 1), jnp.float32),
        grid=(n_groups, N, tpg),
        in_specs=[pl.BlockSpec((1, C, hw_tile), pool_u_map)],
        out_specs=pl.BlockSpec((1, 1, C, 1), lambda g, b, t: (g, b, 0, 0)),
        compiler_params=pltpu.CompilerParams(
            dimension_semantics=("parallel", "parallel", "arbitrary"),
            vmem_limit_bytes=vmem_limit_bytes),
    )(u)

    # Tiny squeeze/excite once for all N (1/HW already folded into wsq_eff).
    z = jnp.sum(partial_sums, axis=0)[:, :, 0]            # (N, C) f32
    z1 = z @ wsq_eff.T                                    # (N, C//2)
    z1 = jnp.where(z1 >= 0, z1, 0.01 * z1)                # LeakyReLU(0.01)
    z2 = z1 @ wex.T                                       # (N, C)
    chan = jax.nn.sigmoid(z2)[:, :, None]                 # (N, C, 1) f32

    out = pl.pallas_call(
        functools.partial(_apply_kernel, use_mxu=use_mxu),
        out_shape=jax.ShapeDtypeStruct((N, C, HW), dtype),
        grid=(N, n_tiles),
        in_specs=[
            pl.BlockSpec((1, C, hw_tile), lambda b, t: (b, 0, t)),
            pl.BlockSpec((1, C, 1), lambda b, t: (b, 0, 0)),
            pl.BlockSpec(wsse_block, lambda b, t: (0, 0)),
        ],
        out_specs=pl.BlockSpec((1, C, hw_tile), lambda b, t: (b, 0, t)),
        compiler_params=pltpu.CompilerParams(
            dimension_semantics=("parallel", "parallel"),
            vmem_limit_bytes=vmem_limit_bytes),
        input_output_aliases=io_alias,
    )(u, chan, wsse_op)

    return out.reshape(N, C, H, W)


# --------------------------------------------------------------------------
# Pure-JAX reference mirroring the PyTorch forward.
# --------------------------------------------------------------------------
def csse_reference(U, w_sq, w_ex, w_sse):
    N, C, H, W = U.shape
    # sSE
    q = jnp.einsum("nchw,c->nhw", U, w_sse.reshape(C))[:, None]    # (N,1,H,W)
    U_sse = U * jax.nn.sigmoid(q)
    # cSE
    z = jnp.mean(U, axis=(2, 3))                                   # (N, C)
    z1 = z @ w_sq.reshape(C // 2, C).T                             # (N, C//2)
    z1 = jnp.where(z1 >= 0, z1, 0.01 * z1)
    z2 = z1 @ w_ex.reshape(C, C // 2).T                            # (N, C)
    U_cse = U * jax.nn.sigmoid(z2)[:, :, None, None]
    return U_cse + U_sse


if __name__ == "__main__":
    key = jax.random.PRNGKey(0)

    def run_case(case_key, N, C, H, W, **kwargs):
        k_u, k_sq, k_ex, k_sse = jax.random.split(case_key, 4)
        U = jax.random.normal(k_u, (N, C, H, W), dtype=jnp.float32)
        w_sq = jax.random.normal(k_sq, (C // 2, C, 1, 1), dtype=jnp.float32) * 0.1
        w_ex = jax.random.normal(k_ex, (C, C // 2, 1, 1), dtype=jnp.float32) * 0.1
        w_sse = jax.random.normal(k_sse, (1, C, 1, 1), dtype=jnp.float32) * 0.05
        out = csse_forward(U, w_sq, w_ex, w_sse, **kwargs)
        jax.block_until_ready(out)
        ref = csse_reference(U, w_sq, w_ex, w_sse)
        assert out.shape == U.shape
        err = float(jnp.max(jnp.abs(out - ref)))
        assert jnp.allclose(out, ref, atol=2e-3, rtol=2e-3), (
            f"mismatch: N={N} C={C} H={H} W={W} kwargs={kwargs} max_err={err}")
        return out

    keys = jax.random.split(key, 4)
    # 1) fused single-pass path (small C -> VPU spatial gate)
    run_case(keys[0], 2, 8, 16, 16)
    # 2) two-pass fallback: non-128-divisible HW, masked tail, 2-way split pool
    run_case(keys[1], 1, 8, 16, 20, max_fused_bytes=0, tile_target_bytes=1)
    # 3) fused path with MXU spatial gate (C >= 128)
    run_case(keys[2], 1, 128, 8, 8)
    # 4) two-pass fallback with MXU apply path
    run_case(keys[3], 1, 128, 8, 8, max_fused_bytes=0)

    print("KERNEL_OK")
</pallas_src>

<mosaic_0001>
module attributes {stable_mosaic.version = 11 : i64} {
  func.func @_fused_kernel(%arg0: i32, %arg1: memref<1x8x256xf32, #tpu.memory_space<vmem>>, %arg2: memref<4x8xf32, #tpu.memory_space<vmem>>, %arg3: memref<8x4xf32, #tpu.memory_space<vmem>>, %arg4: memref<8x1xf32, #tpu.memory_space<vmem>>, %arg5: memref<1x8x256xf32, #tpu.memory_space<vmem>>) attributes {dimension_semantics = [#tpu.dimension_semantics<parallel>], iteration_bounds = array<i64: 2>, scalar_prefetch = 0 : i64, scratch_operands = 0 : i64, tpu.core_type = #tpu.core_type<tc>, window_params = [{transform_indices = @transform_0, window_bounds = array<i64: 1, 8, 256>}, {pipeline_mode = #tpu.pipeline_mode<synchronous>, transform_indices = @transform_1, window_bounds = array<i64: 4, 8>}, {pipeline_mode = #tpu.pipeline_mode<synchronous>, transform_indices = @transform_2, window_bounds = array<i64: 8, 4>}, {pipeline_mode = #tpu.pipeline_mode<synchronous>, transform_indices = @transform_3, window_bounds = array<i64: 8, 1>}, {transform_indices = @transform_4, window_bounds = array<i64: 1, 8, 256>}]} {
    %c0 = arith.constant 0 : index
    %c0_0 = arith.constant 0 : index
    %c0_1 = arith.constant 0 : index
    %0 = vector.load %arg1[%c0, %c0_0, %c0_1] : memref<1x8x256xf32, #tpu.memory_space<vmem>>, vector<1x8x256xf32>
    %1 = vector.shape_cast %0 : vector<1x8x256xf32> to vector<8x256xf32>
    %cst = arith.constant dense<0.000000e+00> : vector<8xf32>
    %2 = vector.multi_reduction <add>, %1, %cst [1] : vector<8x256xf32> to vector<8xf32>
    %3 = vector.shape_cast %2 : vector<8xf32> to vector<8x1xf32>
    %c0_2 = arith.constant 0 : index
    %c0_3 = arith.constant 0 : index
    %4 = vector.load %arg2[%c0_2, %c0_3] : memref<4x8xf32, #tpu.memory_space<vmem>>, vector<4x8xf32>
    %cst_4 = arith.constant dense<0.000000e+00> : vector<4x1xf32>
    %5 = tpu.matmul %4, %3, %cst_4 {dimension_numbers = #tpu.dot_dimension_numbers<[1], [0], [0], [1], [0, 0, 1, 1], [], []>} : vector<4x8xf32>, vector<8x1xf32>, vector<4x1xf32> -> vector<4x1xf32>
    %cst_5 = arith.constant 0.000000e+00 : f32
    %6 = vector.broadcast %cst_5 : f32 to vector<4x1xf32>
    %7 = arith.cmpf oge, %5, %6 : vector<4x1xf32>
    %cst_6 = arith.constant 0.00999999977 : f32
    %8 = vector.broadcast %cst_6 : f32 to vector<4x1xf32>
    %9 = arith.mulf %8, %5 : vector<4x1xf32>
    %10 = arith.select %7, %5, %9 : vector<4x1xi1>, vector<4x1xf32>
    %c0_7 = arith.constant 0 : index
    %c0_8 = arith.constant 0 : index
    %11 = vector.load %arg3[%c0_7, %c0_8] : memref<8x4xf32, #tpu.memory_space<vmem>>, vector<8x4xf32>
    %cst_9 = arith.constant dense<0.000000e+00> : vector<8x1xf32>
    %12 = tpu.matmul %11, %10, %cst_9 {dimension_numbers = #tpu.dot_dimension_numbers<[1], [0], [0], [1], [0, 0, 1, 1], [], []>} : vector<8x4xf32>, vector<4x1xf32>, vector<8x1xf32> -> vector<8x1xf32>
    %13 = arith.negf %12 : vector<8x1xf32>
    %14 = math.exp %13 : vector<8x1xf32>
    %cst_10 = arith.constant 1.000000e+00 : f32
    %15 = vector.broadcast %cst_10 : f32 to vector<8x1xf32>
    %16 = arith.addf %15, %14 : vector<8x1xf32>
    %17 = arith.divf %15, %16 : vector<8x1xf32>
    %c0_11 = arith.constant 0 : index
    %c0_12 = arith.constant 0 : index
    %18 = vector.load %arg4[%c0_11, %c0_12] : memref<8x1xf32, #tpu.memory_space<vmem>>, vector<8x1xf32>
    %19 = vector.broadcast %18 : vector<8x1xf32> to vector<8x256xf32>
    %20 = arith.mulf %1, %19 : vector<8x256xf32>
    %cst_13 = arith.constant dense<0.000000e+00> : vector<256xf32>
    %21 = vector.multi_reduction <add>, %20, %cst_13 [0] : vector<8x256xf32> to vector<256xf32>
    %22 = vector.shape_cast %21 : vector<256xf32> to vector<1x256xf32>
    %23 = arith.negf %22 : vector<1x256xf32>
    %24 = math.exp %23 : vector<1x256xf32>
    %cst_14 = arith.constant 1.000000e+00 : f32
    %25 = vector.broadcast %cst_14 : f32 to vector<1x256xf32>
    %26 = arith.addf %25, %24 : vector<1x256xf32>
    %27 = arith.divf %25, %26 : vector<1x256xf32>
    %28 = vector.broadcast %17 : vector<8x1xf32> to vector<8x256xf32>
    %29 = vector.broadcast %27 : vector<1x256xf32> to vector<8x256xf32>
    %30 = arith.addf %28, %29 : vector<8x256xf32>
    %31 = arith.mulf %1, %30 : vector<8x256xf32>
    %c0_15 = arith.constant 0 : index
    %c0_16 = arith.constant 0 : index
    %c0_17 = arith.constant 0 : index
    %32 = vector.load %arg5[%c0_15, %c0_16, %c0_17] : memref<1x8x256xf32, #tpu.memory_space<vmem>>, vector<1x8x256xf32>
    %33 = vector.shape_cast %32 : vector<1x8x256xf32> to vector<8x256xf32>
    %34 = vector.shape_cast %31 : vector<8x256xf32> to vector<1x8x256xf32>
    tpu.vector_store %arg5[%c0_15, %c0_16, %c0_17], %34 {strides = array<i32>} : memref<1x8x256xf32, #tpu.memory_space<vmem>>, vector<1x8x256xf32>,
    return
  }
  func.func @transform_0(%arg0: i32) -> (i32, i32, i32) {
    %c0_i32 = arith.constant 0 : i32
    %c0_i32_0 = arith.constant 0 : i32
    %c0_i32_1 = arith.constant 0 : i32
    return %arg0, %c0_i32, %c0_i32_0 : i32, i32, i32
  }
  func.func @transform_1(%arg0: i32) -> (i32, i32) {
    %c0_i32 = arith.constant 0 : i32
    %c0_i32_0 = arith.constant 0 : i32
    %c0_i32_1 = arith.constant 0 : i32
    return %c0_i32, %c0_i32_0 : i32, i32
  }
  func.func @transform_2(%arg0: i32) -> (i32, i32) {
    %c0_i32 = arith.constant 0 : i32
    %c0_i32_0 = arith.constant 0 : i32
    %c0_i32_1 = arith.constant 0 : i32
    return %c0_i32, %c0_i32_0 : i32, i32
  }
  func.func @transform_3(%arg0: i32) -> (i32, i32) {
    %c0_i32 = arith.constant 0 : i32
    %c0_i32_0 = arith.constant 0 : i32
    %c0_i32_1 = arith.constant 0 : i32
    return %c0_i32, %c0_i32_0 : i32, i32
  }
  func.func @transform_4(%arg0: i32) -> (i32, i32, i32) {
    %c0_i32 = arith.constant 0 : i32
    %c0_i32_0 = arith.constant 0 : i32
    %c0_i32_1 = arith.constant 0 : i32
    return %arg0, %c0_i32, %c0_i32_0 : i32, i32, i32
  }
}

</mosaic_0001>

<llo_original>
// kernel: tpu_custom_call.1
$region0: #{tpu_custom_call.1}
  #allocation0 [shape = 'u32[]', space=smem, size = 0x4, offset = 0x4, fixed_abs, tag = 'smem constant byte address 0x4 - core index']
  #allocation1 [shape = 'u32[72,128]{1,0:T(1,128)}', space=vmem, size = 0x9000, scoped, tag = 'internal scratch']
  %s0 = inlined_call_operand.hbm [shape: f32[2,8,256], index: 0, kind: input, shape index: {}]
  %s1 = inlined_call_operand.vmem [shape: f32[4,8], index: 1, kind: input, shape index: {}]
  %s2 = inlined_call_operand.vmem [shape: f32[8,4], index: 2, kind: input, shape index: {}]
  %s3 = inlined_call_operand.vmem [shape: f32[8,1], index: 3, kind: input, shape index: {}]
  %s4 = inlined_call_operand.hbm [shape: f32[2,8,256], index: 4, kind: output, shape index: {}]
  %s5 = sld [smem:[#allocation0]]
  $region53: #{tpu_custom_call.1} parent=0
    _
  %s7 = ssub.s32 1, %s5
  %s8 = scalar_select 0, %s7, %s5
  $region1: #{tpu_custom_call.1} parent=0
    #allocation2 [shape = 'u8[16384]{0}', space=vmem, size = 0x4000, scoped, tag = 'input window, operand 0']
    #allocation3 [shape = 's32[2]{0}', space=sflag, size = 0x8, scoped, tag = 'scoped memory for tpu_custom_call.1']
    #allocation4 [shape = 's32[2]{0}', space=sflag, size = 0x8, scoped, tag = 'scoped memory for tpu_custom_call.1']
    #allocation5 [shape = 'u8[16384]{0}', space=vmem, size = 0x4000, scoped, tag = 'output window, operand 0']
    %9 = vsyncpa [#allocation3], 0
    %s10 = scalar_lea.sflag [#allocation3], 1
    %11 = vsyncpa %s10, 0
    %12 = vsyncpa [#allocation4], 0
    %s13 = scalar_lea.sflag [#allocation4], 1
    %14 = vsyncpa %s13, 0
    loop: start=0, step=1, limit=4
    $region2: #{tpu_custom_call.1} parent=1 // loop_pre_header
      _
    $region3: #{tpu_custom_call.1} parent=1 // loop_header
      %s16 = sphi 0, %s20
      %p17 = scmp.ge.s32.totalorder %s16, 4
      %s26 = sphi 0, %s28
      %s29 = sphi 0, %s26
      %s30 = sphi 0, %s29
      %s46 = sphi 0, %s30
      %s50 = sphi 0, %s50
      %s52 = sphi 0, %s50
      %s53 = sphi 0, %s52
      %s67 = sphi 0, %s53
      %s71 = sphi 0, %s71
      %s73 = sphi 0, %s71
      %s74 = sphi 0, %s73
      %s88 = sphi 0, %s74
      %s92 = sphi 0, %s92
      %s94 = sphi 0, %s92
      %s95 = sphi 0, %s94
      %s109 = sphi 0, %s95
      %s115 = sphi 0, %s117
      %s118 = sphi 0, %s115
      %s119 = sphi 0, %s118
      %s135 = sphi 0, %s119
    $region4: #{tpu_custom_call.1} parent=1 // loop_header_branch
      %19 = sbr.rel (%p17) target = $region8
    $region5: #{tpu_custom_call.1} parent=1 // loop_body
      %s21 = ssub.s32 %s16, 1
      %s22 = ssub.s32 %s16, 2
      %s23 = sadd.s32 %s16, 1
      %s24 = ssub.s32 %s16, %s23
      %p25 = scmp.eq.s32.totalorder %s24, 0
      %s27 = sadd.s32 %s26, 1
      %s28 = scalar_select %p25, %s26, %s27
      %p31 = pneg %p25
      %p32 = scmp.eq.s32.totalorder %s16, 1
      %p33 = por %p31, %p32
      %p34 = scmp.ne.s32.totalorder %s26, %s29
      %p35 = scmp.eq.s32.totalorder %s16, 0
      %p36 = por %p34, %p35
      %p37 = scmp.ne.s32.totalorder %s26, %s29
      %p38 = scmp.eq.s32.totalorder %s21, 1
      %p39 = por %p37, %p38
      %p40 = scmp.ne.s32.totalorder %s29, %s30
      %p41 = scmp.eq.s32.totalorder %s21, 0
      %p42 = por %p40, %p41
      %p43 = scmp.ne.s32.totalorder %s29, %s30
      %p44 = scmp.eq.s32.totalorder %s22, 1
      %p45 = por %p43, %p44
      %p47 = scmp.ne.s32.totalorder %s30, %s46
      %p48 = scmp.eq.s32.totalorder %s22, 0
      %p49 = por %p47, %p48
      %s51 = sadd.s32 %s50, 1
      %p54 = scmp.eq.s32.totalorder %s16, 1
      %p55 = scmp.ne.s32.totalorder %s50, %s52
      %p56 = scmp.eq.s32.totalorder %s16, 0
      %p57 = por %p55, %p56
      %p58 = scmp.ne.s32.totalorder %s50, %s52
      %p59 = scmp.eq.s32.totalorder %s21, 1
      %p60 = por %p58, %p59
      %p61 = scmp.ne.s32.totalorder %s52, %s53
      %p62 = scmp.eq.s32.totalorder %s21, 0
      %p63 = por %p61, %p62
      %p64 = scmp.ne.s32.totalorder %s52, %s53
      %p65 = scmp.eq.s32.totalorder %s22, 1
      %p66 = por %p64, %p65
      %p68 = scmp.ne.s32.totalorder %s53, %s67
      %p69 = scmp.eq.s32.totalorder %s22, 0
      %p70 = por %p68, %p69
      %s72 = sadd.s32 %s71, 1
      %p75 = scmp.eq.s32.totalorder %s16, 1
      %p76 = scmp.ne.s32.totalorder %s71, %s73
      %p77 = scmp.eq.s32.totalorder %s16, 0
      %p78 = por %p76, %p77
      %p79 = scmp.ne.s32.totalorder %s71, %s73
      %p80 = scmp.eq.s32.totalorder %s21, 1
      %p81 = por %p79, %p80
      %p82 = scmp.ne.s32.totalorder %s73, %s74
      %p83 = scmp.eq.s32.totalorder %s21, 0
      %p84 = por %p82, %p83
      %p85 = scmp.ne.s32.totalorder %s73, %s74
      %p86 = scmp.eq.s32.totalorder %s22, 1
      %p87 = por %p85, %p86
      %p89 = scmp.ne.s32.totalorder %s74, %s88
      %p90 = scmp.eq.s32.totalorder %s22, 0
      %p91 = por %p89, %p90
      %s93 = sadd.s32 %s92, 1
      %p96 = scmp.eq.s32.totalorder %s16, 1
      %p97 = scmp.ne.s32.totalorder %s92, %s94
      %p98 = scmp.eq.s32.totalorder %s16, 0
      %p99 = por %p97, %p98
      %p100 = scmp.ne.s32.totalorder %s92, %s94
      %p101 = scmp.eq.s32.totalorder %s21, 1
      %p102 = por %p100, %p101
      %p103 = scmp.ne.s32.totalorder %s94, %s95
      %p104 = scmp.eq.s32.totalorder %s21, 0
      %p105 = por %p103, %p104
      %p106 = scmp.ne.s32.totalorder %s94, %s95
      %p107 = scmp.eq.s32.totalorder %s22, 1
      %p108 = por %p106, %p107
      %p110 = scmp.ne.s32.totalorder %s95, %s109
      %p111 = scmp.eq.s32.totalorder %s22, 0
      %p112 = por %p110, %p111
      %s113 = ssub.s32 %s16, %s23
      %p114 = scmp.eq.s32.totalorder %s113, 0
      %s116 = sadd.s32 %s115, 1
      %s117 = scalar_select %p114, %s115, %s116
      %p120 = pneg %p114
      %p121 = scmp.eq.s32.totalorder %s16, 1
      %p122 = por %p120, %p121
      %p123 = scmp.ne.s32.totalorder %s115, %s118
      %p124 = scmp.eq.s32.totalorder %s16, 0
      %p125 = por %p123, %p124
      %p126 = scmp.ne.s32.totalorder %s115, %s118
      %p127 = scmp.eq.s32.totalorder %s21, 1
      %p128 = por %p126, %p127
      %p129 = scmp.ne.s32.totalorder %s118, %s119
      %p130 = scmp.eq.s32.totalorder %s21, 0
      %p131 = por %p129, %p130
      %p132 = scmp.ne.s32.totalorder %s118, %s119
      %p133 = scmp.eq.s32.totalorder %s22, 1
      %p134 = por %p132, %p133
      %p136 = scmp.ne.s32.totalorder %s119, %s135
      %p137 = scmp.eq.s32.totalorder %s22, 0
      %p138 = por %p136, %p137
      %p139 = scmp.le.s32.totalorder 1, %s16
      %p140 = scmp.lt.s32.totalorder %s16, 3
      %p141 = pnand %p139, %p140
      %p142 = pneg %p141
      // Predicated region
      $region9: #{tpu_custom_call.1} parent=5 // pred_check
        _
      $region10: #{tpu_custom_call.1} parent=5 // pred_check_branch
        %144 = sbr.rel (%p141) target = $region12
      $region11: #{tpu_custom_call.1} parent=5 // pred_region
        %s145 = ssub.s32 %s16, 1
        // Predicated region
        $region13: #{tpu_custom_call.1} parent=11 // pred_check
          %p146 = pneg %p63
        $region14: #{tpu_custom_call.1} parent=11 // pred_check_branch
          %148 = sbr.rel (%p146) target = $region16
        $region15: #{tpu_custom_call.1} parent=11 // pred_region
          _
        $region16: #{tpu_custom_call.1} parent=11 // pred_fallthru
          _
        // Predicated region
        $region17: #{tpu_custom_call.1} parent=11 // pred_check
          %p149 = pneg %p84
        $region18: #{tpu_custom_call.1} parent=11 // pred_check_branch
          %151 = sbr.rel (%p149) target = $region20
        $region19: #{tpu_custom_call.1} parent=11 // pred_region
          _
        $region20: #{tpu_custom_call.1} parent=11 // pred_fallthru
          _
        // Predicated region
        $region21: #{tpu_custom_call.1} parent=11 // pred_check
          %p152 = pneg %p105
        $region22: #{tpu_custom_call.1} parent=11 // pred_check_branch
          %154 = sbr.rel (%p152) target = $region24
        $region23: #{tpu_custom_call.1} parent=11 // pred_region
          _
        $region24: #{tpu_custom_call.1} parent=11 // pred_fallthru
          _
      $region12: #{tpu_custom_call.1} parent=5 // pred_fallthru
        _
      %p155 = scmp.lt.s32.totalorder %s16, 2
      // Predicated region
      $region25: #{tpu_custom_call.1} parent=5 // pred_check
        %p156 = pneg %p155
      $region26: #{tpu_custom_call.1} parent=5 // pred_check_branch
        %158 = sbr.rel (%p156) target = $region28
      $region27: #{tpu_custom_call.1} parent=5 // pred_region
        // Predicated region
        $region29: #{tpu_custom_call.1} parent=27 // pred_check
          %p159 = pneg %p36
        $region30: #{tpu_custom_call.1} parent=27 // pred_check_branch
          %161 = sbr.rel (%p159) target = $region32
        $region31: #{tpu_custom_call.1} parent=27 // pred_region
          %s162 = sand.u32 %s26, 1
          %s163 = scalar_lea.sflag [#allocation3], %s162
          %s164 = sand.u32 %s26, 1
          %s165 = smul.addr %s164, 16
          %s166 = scalar_lea.vmem [#allocation2], %s165
          %168 = vsyncadd %s163, 0
          %s169 = smul.addr %s16, 2
          %s170 = smul.addr %s169, 8
          %s171 = scalar_lea.hbm %s0, %s170
          %s173 = sshll.u32 %s171, 4
          %s174 = int_to_ptr.hbm [resolvable:$true] %s173
          %s175 = sshll.u32 %s166, 4
          %s176 = int_to_ptr.vmem [resolvable:$true] %s175
          %178 = dma.hbm_to_vmem [thread:$0]  %s174, 256, %s176, %s163
        $region32: #{tpu_custom_call.1} parent=27 // pred_fallthru
          _
      $region28: #{tpu_custom_call.1} parent=5 // pred_fallthru
        _
      %p179 = scmp.le.s32.totalorder 1, %s16
      %p180 = scmp.lt.s32.totalorder %s16, 3
      %p181 = pnand %p179, %p180
      %p182 = pneg %p181
      // Predicated region
      $region33: #{tpu_custom_call.1} parent=5 // pred_check
        _
      $region34: #{tpu_custom_call.1} parent=5 // pred_check_branch
        %184 = sbr.rel (%p181) target = $region36
      $region35: #{tpu_custom_call.1} parent=5 // pred_region
        %s185 = ssub.s32 %s16, 1
        %s186 = sand.u32 %s29, 1
        %s187 = scalar_lea.sflag [#allocation3], %s186
        %s188 = sand.u32 %s29, 1
        %s189 = smul.addr %s188, 16
        %s190 = scalar_lea.vmem [#allocation2], %s189
        // Predicated region
        $region37: #{tpu_custom_call.1} parent=35 // pred_check
          %p191 = pneg %p42
        $region38: #{tpu_custom_call.1} parent=35 // pred_check_branch
          %193 = sbr.rel (%p191) target = $region40
        $region39: #{tpu_custom_call.1} parent=35 // pred_region
          %195 = dma.done %s187, 256
        $region40: #{tpu_custom_call.1} parent=35 // pred_fallthru
          _
        %s196 = sand.u32 %s29, 1
        %s197 = scalar_lea.sflag [#allocation3], %s196
        %s198 = sand.u32 %s29, 1
        %s199 = smul.addr %s198, 16
        %s200 = scalar_lea.vmem [#allocation2], %s199
        %p201 = pneg %p42
        %p202 = pneg %p39
        %p203 = pneg %p63
        %p204 = pneg %p60
        %p205 = pneg %p84
        %p206 = pneg %p81
        %p207 = pneg %p105
        %p208 = pneg %p102
        %p209 = pneg %p131
        %p210 = pneg %p128
        %s211 = sand.u32 %s118, 1
        %s212 = scalar_lea.sflag [#allocation4], %s211
        %s213 = sand.u32 %s118, 1
        %s214 = smul.addr %s213, 16
        %s215 = scalar_lea.vmem [#allocation5], %s214
        %v216 = vld [vmem:[%s190] sm:$0xff]
        %v217 = vld [vmem:[%s190 + $0x8] sm:$0xff]
        %v218 = vadd.f32 %v216, %v217
        %219 = vadd.xlane.f32.xlu0 %v218
        %v220 = vpop.xlane.xlu0 %219
        %v221 = vld [vmem:[%s1] sm:$0xf]
        %vm222 = vcmask 64512
        %v224 = vsel %vm222, %v221, 0
        %226 = vmatpush.msra.mxu0 0.0
        %227 = vmatpush.msra.mxu0 0.0
        %228 = vmatpush.msra.mxu0 0.0
        %229 = vmatpush.msra.mxu0 0.0
        %230 = vmatpush.msra.mxu0 0.0
        %231 = vmatpush.msra.mxu0 0.0
        %232 = vmatpush.msra.mxu0 0.0
        %233 = vmatpush.msra.mxu0 0.0
        %234 = vmatpush.msra.mxu0 0.0
        %235 = vmatpush.msra.mxu0 0.0
        %236 = vmatpush.msra.mxu0 0.0
        %237 = vmatpush.msra.mxu0 0.0
        %238 = vmatpush.msra.mxu0 0.0
        %239 = vmatpush.msra.mxu0 0.0
        %240 = vmatpush.msra.mxu0 0.0
        %241 = vmatpush.msra.mxu0 %v220
        %242 = vmatmul.f32.gmra.mxu0 %v224
        %v243 = vpop.f32.mrf.mxu0
        %v244 = vadd.f32 0.0, %v243
        %245 = vdwg.mxu0
        %vm246 = vcmp.ge.f32.partialorder %v244, 0.0
        %v247 = vmul.f32 %v244, 0.01
        %v248 = vsel %vm246, %v244, %v247
        %v249 = vld [vmem:[%s2] sm:$0xff]
        %vm250 = vcmask 31744
        %v252 = vsel %vm250, %v249, 0
        %vm254 = vcmask 1043456
        %v256 = vsel %vm254, %v248, 0
        %258 = vmatpush.msra.mxu0 0.0
        %259 = vmatpush.msra.mxu0 0.0
        %260 = vmatpush.msra.mxu0 0.0
        %261 = vmatpush.msra.mxu0 0.0
        %262 = vmatpush.msra.mxu0 0.0
        %263 = vmatpush.msra.mxu0 0.0
        %264 = vmatpush.msra.mxu0 0.0
        %265 = vmatpush.msra.mxu0 0.0
        %266 = vmatpush.msra.mxu0 0.0
        %267 = vmatpush.msra.mxu0 0.0
        %268 = vmatpush.msra.mxu0 0.0
        %269 = vmatpush.msra.mxu0 0.0
        %270 = vmatpush.msra.mxu0 0.0
        %271 = vmatpush.msra.mxu0 0.0
        %272 = vmatpush.msra.mxu0 0.0
        %273 = vmatpush.msra.mxu0 %v256
        %274 = vmatmul.f32.gmra.mxu0 %v252
        %v275 = vpop.f32.mrf.mxu0
        %v276 = vadd.f32 0.0, %v275
        %277 = vdwg.mxu0
        %v278 = vxor.u32 %v276, 2147483648
        %v279 = vmul.f32 %v278, 1.442695
        %v280 = vpow.pop %v279
        %v281 = vadd.f32 %v280, 1.0
        %v282 = vrcp.pop %v281
        %v283 = vmul.f32 %v281, %v282
        %v284 = vsub.f32 1.0, %v283
        %v285 = vmul.f32 %v282, %v284
        %v286 = vadd.f32 %v282, %v285
        %vm287 = vweird.f32 %v281
        %vm288 = vweird.f32 %v282
        %vm289 = vmor %vm287, %vm288
        %v290 = vsel %vm289, %v282, %v286
        %v291 = vand.u32 2147483647, %v281
        %vm292 = vcmp.eq.f32.partialorder %v291, 8.507059e+37
        %v293 = vand.u32 %v281, 2147483648
        %v294 = vor.u32 1.1754944e-38, %v293
        %v295 = vsel %vm292, %v294, %v290
        %v296 = vmul.f32 1.0, %v295
        %v297 = vld [vmem:[%s3] sm:$0xff]
        %299 = vset.pattern.permute.xlu0 0
        %300 = vperm.xlu0 %299, %v297
        %v301 = vpop.permute.xlu0 %300
        %v303 = vmul.f32 %v216, %v301
        %v304 = vmul.f32 %v217, %v301
        %v305 = vrot.slane %v303, 4
        %v306 = vadd.f32 %v303, %v305
        %v307 = vrot.slane %v306, 2
        %v308 = vadd.f32 %v306, %v307
        %v309 = vrot.slane %v308, 1
        %v310 = vadd.f32 %v308, %v309
        %v311 = vrot.slane %v304, 4
        %v312 = vadd.f32 %v304, %v311
        %v313 = vrot.slane %v312, 2
        %v314 = vadd.f32 %v312, %v313
        %v315 = vrot.slane %v314, 1
        %v316 = vadd.f32 %v314, %v315
        %v317 = vxor.u32 %v310, 2147483648
        %v318 = vxor.u32 %v316, 2147483648
        %v319 = vmul.f32 %v317, 1.442695
        %v320 = vpow.pop %v319
        %v321 = vmul.f32 %v318, 1.442695
        %v322 = vpow.pop %v321
        %v323 = vadd.f32 %v320, 1.0
        %v324 = vadd.f32 %v322, 1.0
        %v325 = vrcp.pop %v323
        %v326 = vmul.f32 %v323, %v325
        %v327 = vsub.f32 1.0, %v326
        %v328 = vmul.f32 %v325, %v327
        %v329 = vadd.f32 %v325, %v328
        %vm330 = vweird.f32 %v323
        %vm331 = vweird.f32 %v325
        %vm332 = vmor %vm330, %vm331
        %v333 = vsel %vm332, %v325, %v329
        %v334 = vand.u32 2147483647, %v323
        %vm335 = vcmp.eq.f32.partialorder %v334, 8.507059e+37
        %v336 = vand.u32 %v323, 2147483648
        %v337 = vor.u32 1.1754944e-38, %v336
        %v338 = vsel %vm335, %v337, %v333
        %v339 = vmul.f32 1.0, %v338
        %v340 = vrcp.pop %v324
        %v341 = vmul.f32 %v324, %v340
        %v342 = vsub.f32 1.0, %v341
        %v343 = vmul.f32 %v340, %v342
        %v344 = vadd.f32 %v340, %v343
        %vm345 = vweird.f32 %v324
        %vm346 = vweird.f32 %v340
        %vm347 = vmor %vm345, %vm346
        %v348 = vsel %vm347, %v340, %v344
        %v349 = vand.u32 2147483647, %v324
        %vm350 = vcmp.eq.f32.partialorder %v349, 8.507059e+37
        %v351 = vand.u32 %v324, 2147483648
        %v352 = vor.u32 1.1754944e-38, %v351
        %v353 = vsel %vm350, %v352, %v348
        %v354 = vmul.f32 1.0, %v353
        %356 = vset.pattern.permute.xlu0 0
        %357 = vperm.xlu0 %356, %v296
        %v358 = vpop.permute.xlu0 %357
        %v360 = vadd.f32 %v358, %v339
        %v361 = vadd.f32 %v358, %v354
        %v362 = vmul.f32 %v216, %v360
        %v363 = vmul.f32 %v217, %v361
        %364 = vst [vmem:[%s215] sm:$0xff] %v362
        %365 = vst [vmem:[%s215 + $0x8] sm:$0xff] %v363
        %s366 = sand.u32 %s118, 1
        %s367 = scalar_lea.sflag [#allocation4], %s366
        %s368 = sand.u32 %s118, 1
        %s369 = smul.addr %s368, 16
        %s370 = scalar_lea.vmem [#allocation5], %s369
        // Predicated region
        $region41: #{tpu_custom_call.1} parent=35 // pred_check
          %p371 = pneg %p128
        $region42: #{tpu_custom_call.1} parent=35 // pred_check_branch
          %373 = sbr.rel (%p371) target = $region44
        $region43: #{tpu_custom_call.1} parent=35 // pred_region
          %375 = vsyncadd %s367, 0
          %s376 = smul.addr %s21, 2
          %s377 = smul.addr %s376, 8
          %s378 = scalar_lea.hbm %s4, %s377
          %s380 = sshll.u32 %s370, 4
          %s381 = int_to_ptr.vmem [resolvable:$true] %s380
          %s382 = sshll.u32 %s378, 4
          %s383 = int_to_ptr.hbm [resolvable:$true] %s382
          %385 = dma.vmem_to_hbm [thread:$0]  %s381, 256, %s383, %s367
        $region44: #{tpu_custom_call.1} parent=35 // pred_fallthru
          _
      $region36: #{tpu_custom_call.1} parent=5 // pred_fallthru
        _
      %p386 = scmp.le.s32.totalorder 2, %s16
      // Predicated region
      $region45: #{tpu_custom_call.1} parent=5 // pred_check
        %p387 = pneg %p386
      $region46: #{tpu_custom_call.1} parent=5 // pred_check_branch
        %389 = sbr.rel (%p387) target = $region48
      $region47: #{tpu_custom_call.1} parent=5 // pred_region
        %s390 = ssub.s32 %s16, 2
        // Predicated region
        $region49: #{tpu_custom_call.1} parent=47 // pred_check
          %p391 = pneg %p134
        $region50: #{tpu_custom_call.1} parent=47 // pred_check_branch
          %393 = sbr.rel (%p391) target = $region52
        $region51: #{tpu_custom_call.1} parent=47 // pred_region
          %s394 = sand.u32 %s119, 1
          %s395 = scalar_lea.sflag [#allocation4], %s394
          %s396 = sand.u32 %s119, 1
          %s397 = smul.addr %s396, 16
          %s398 = scalar_lea.vmem [#allocation5], %s397
          %400 = dma.done %s395, 256
        $region52: #{tpu_custom_call.1} parent=47 // pred_fallthru
          _
      $region48: #{tpu_custom_call.1} parent=5 // pred_fallthru
        _
    $region6: #{tpu_custom_call.1} parent=1 // loop_footer
      %s20 = sadd.s32 1, %s16
    $region7: #{tpu_custom_call.1} parent=1 // loop_footer_branch
      %15 = sbr.rel target = $region3
    $region8: #{tpu_custom_call.1} parent=1 // loop_exit
      _
    %401 = vsyncpa [#allocation3], 1
    %s402 = scalar_lea.sflag [#allocation3], 1
    %403 = vsyncpa %s402, 1
    %404 = vsyncpa [#allocation4], 1
    %s405 = scalar_lea.sflag [#allocation4], 1
    %406 = vsyncpa %s405, 1

</llo_original>
